<compile_context>
chip_gen: v6e
topology: v6e:2x2x1
jax: 0.10.0
libtpu: 0.0.40
codegen_flags: <defaults>
</compile_context>

<pallas_src>
import functools

import jax
import jax.numpy as jnp
from jax.experimental import pallas as pl
from jax.experimental.pallas import tpu as pltpu


# ---------------------------------------------------------------------------
# Kernels
# ---------------------------------------------------------------------------
def _actor_fused_kernel(x_ref, w1_ref, b1_ref, w2_ref, b2_ref, w3_ref, b3_ref,
                        o_ref, *, matmul_dtype):
    """All three layers fused; weights fully resident in VMEM (constant index maps)."""
    x = x_ref[...].astype(matmul_dtype)

    h1 = jnp.dot(x, w1_ref[...], preferred_element_type=jnp.float32) + b1_ref[...]
    h1 = jnp.maximum(h1, 0.0)

    h2 = jnp.dot(h1.astype(matmul_dtype), w2_ref[...],
                 preferred_element_type=jnp.float32) + b2_ref[...]
    h2 = jnp.maximum(h2, 0.0)

    z3 = jnp.dot(h2.astype(matmul_dtype), w3_ref[...],
                 preferred_element_type=jnp.float32) + b3_ref[...]
    # exp and the approximate reciprocal both land on the EUP slot (VPU stays free).
    o_ref[...] = pl.reciprocal(1.0 + jnp.exp(-z3), approx=True)


def _actor_h1_tiled_kernel(x_ref, w1_ref, b1_ref, w2_ref, b2_ref, w3_ref, b3_ref,
                           o_ref, acc_ref, *, matmul_dtype):
    """Fallback for large nn_scale: grid axis 1 tiles fc1's output dim (H1); fc2's
    pre-activation is accumulated in an f32 VMEM scratch (standard P3 pattern)."""
    j = pl.program_id(1)

    @pl.when(j == 0)
    def _init():
        acc_ref[...] = jnp.zeros_like(acc_ref)

    x = x_ref[...].astype(matmul_dtype)
    h1 = jnp.dot(x, w1_ref[...], preferred_element_type=jnp.float32) + b1_ref[...]
    h1 = jnp.maximum(h1, 0.0)
    acc_ref[...] += jnp.dot(h1.astype(matmul_dtype), w2_ref[...],
                            preferred_element_type=jnp.float32)

    @pl.when(j == pl.num_programs(1) - 1)
    def _finalize():
        h2 = jnp.maximum(acc_ref[...] + b2_ref[...], 0.0)
        z3 = jnp.dot(h2.astype(matmul_dtype), w3_ref[...],
                     preferred_element_type=jnp.float32) + b3_ref[...]
        o_ref[...] = pl.reciprocal(1.0 + jnp.exp(-z3), approx=True)


# ---------------------------------------------------------------------------
# Sizing helpers
# ---------------------------------------------------------------------------
def _ceil_to(n, m):
    return ((int(n) + m - 1) // m) * m


def _block_vmem_bytes(rows, cols, itemsize):
    """VMEM footprint of one (rows, cols) block after (sublane, 128-lane) tile padding."""
    sublane = max(8, 32 // itemsize)            # f32 -> 8 sublanes, bf16 -> 16
    return _ceil_to(max(rows, 1), sublane) * _ceil_to(max(cols, 1), 128) * itemsize


def _vmem_capacity_bytes():
    """Per-core VMEM capacity; conservative 64 MiB (v7x-sized) if the query fails."""
    try:
        cap = int(pltpu.get_tpu_info().vmem_capacity_bytes)
        if cap > 0:
            return min(cap, 128 << 20)
    except Exception:
        pass
    return 64 << 20


def _pick_fused_batch_tile(D, H1p, H2p, wbytes, budget, max_tile=2048):
    """Largest multiple-of-8 batch tile (<=2048) for the fused path, or None if the
    resident weights alone don't fit the budget."""
    Dl = _ceil_to(D, 128)
    fixed = 2 * (_block_vmem_bytes(D, H1p, wbytes)        # w1 (x2: default double-buffer)
                 + _block_vmem_bytes(H1p, H2p, wbytes)    # w2
                 + _block_vmem_bytes(H2p, D, wbytes)      # w3
                 + _block_vmem_bytes(1, H1p, 4)           # b1
                 + _block_vmem_bytes(1, H2p, 4)           # b2
                 + _block_vmem_bytes(1, D, 4))            # b3
    # Per batch-row: x & out (double-buffered, lane-padded) + f32 h1/h2/z3 (+ MXU-dtype copies).
    per_row = 4 * (2 * Dl + 2 * Dl + H1p + H2p + Dl)
    if wbytes < 4:
        per_row += wbytes * (Dl + H1p + H2p)
    avail = budget - fixed
    if avail < 8 * per_row:
        return None
    tile = min(max_tile, (avail // per_row) // 8 * 8)
    return int(tile), int(fixed), int(per_row)


def _pick_h1_tiles(D, H1p, H2p, wbytes, budget, hidden_tile=None, max_tile=1024):
    """(batch_tile, h1_tile) for the H1-tiled fallback, or None if even that won't fit."""
    Dl = _ceil_to(D, 128)
    cands = ([int(hidden_tile)] if hidden_tile is not None
             else [t for t in (1024, 512, 256, 128) if t <= H1p])
    for th1 in cands:
        if th1 % 128 or H1p % th1:      # h1 tiles must be lane-dense and divide H1p exactly
            continue
        fixed = 2 * (_block_vmem_bytes(H2p, D, wbytes)     # w3 resident
                     + _block_vmem_bytes(1, H2p, 4)        # b2
                     + _block_vmem_bytes(1, D, 4)          # b3
                     + _block_vmem_bytes(D, th1, wbytes)   # streamed w1 chunk (double-buffered)
                     + _block_vmem_bytes(1, th1, 4)        # streamed b1 chunk
                     + _block_vmem_bytes(th1, H2p, wbytes))  # streamed w2 chunk
        per_row = 4 * (2 * Dl + 2 * Dl + H2p + th1 + Dl)   # x/out dbl-buf + acc + h1 chunk + z3
        if wbytes < 4:
            per_row += wbytes * (Dl + th1 + H2p)
        avail = budget - fixed
        if avail < 8 * per_row:
            continue
        tile = min(max_tile, (avail // per_row) // 8 * 8)
        return int(tile), int(th1), int(fixed), int(per_row)
    return None


# ---------------------------------------------------------------------------
# Params
# ---------------------------------------------------------------------------
def init_actor_params(key, num_inputs, nn_scale):
    """Deterministic init mirroring nn.Linear default (uniform +/- 1/sqrt(fan_in)).
    Weights are stored (in, out) = transpose of PyTorch's (out, in)."""
    if nn_scale <= 0:
        nn_scale = 1
    h1 = 32 * nn_scale
    h2 = 16 * nn_scale

    def linear_init(k, fan_in, fan_out):
        kw, kb = jax.random.split(k)
        bound = 1.0 / jnp.sqrt(float(fan_in))
        w = jax.random.uniform(kw, (fan_in, fan_out), jnp.float32, -bound, bound)
        b = jax.random.uniform(kb, (1, fan_out), jnp.float32, -bound, bound)
        return w, b

    k1, k2, k3 = jax.random.split(key, 3)
    w1, b1 = linear_init(k1, num_inputs, h1)
    w2, b2 = linear_init(k2, h1, h2)
    w3, b3 = linear_init(k3, h2, num_inputs)
    return {"w1": w1, "b1": b1, "w2": w2, "b2": b2, "w3": w3, "b3": b3}


def prepare_params(params, matmul_dtype=jnp.bfloat16):
    """One-time prep: pad hidden dims to 128-lane multiples (zero pad -> exact) and cast
    weights for the MXU.  Hoisted out of the per-step forward call."""
    w1 = jnp.asarray(params["w1"], jnp.float32)
    w2 = jnp.asarray(params["w2"], jnp.float32)
    w3 = jnp.asarray(params["w3"], jnp.float32)
    b1 = jnp.asarray(params["b1"], jnp.float32).reshape(1, -1)
    b2 = jnp.asarray(params["b2"], jnp.float32).reshape(1, -1)
    b3 = jnp.asarray(params["b3"], jnp.float32).reshape(1, -1)
    D, H1 = w1.shape
    H2 = w2.shape[1]
    H1p, H2p = _ceil_to(H1, 128), _ceil_to(H2, 128)

    def pad(a, rows, cols):
        return jnp.pad(a, ((0, rows - a.shape[0]), (0, cols - a.shape[1])))

    return {
        "w1": pad(w1, D, H1p).astype(matmul_dtype),
        "b1": pad(b1, 1, H1p),
        "w2": pad(w2, H1p, H2p).astype(matmul_dtype),
        "b2": pad(b2, 1, H2p),
        "w3": pad(w3, H2p, D).astype(matmul_dtype),
        "b3": b3,
    }


# ---------------------------------------------------------------------------
# Forward
# ---------------------------------------------------------------------------
def actor_forward(x, prepared, *, batch_tile=None, force_hidden_tiled=False,
                  hidden_tile=None):
    """x: (B, num_inputs) float32.  prepared: output of prepare_params()."""
    x = jnp.asarray(x, jnp.float32)
    B, D = x.shape
    w1, b1 = prepared["w1"], prepared["b1"]
    w2, b2 = prepared["w2"], prepared["b2"]
    w3, b3 = prepared["w3"], prepared["b3"]
    H1p, H2p = w1.shape[1], w2.shape[1]
    assert w1.shape[0] == D and w3.shape[1] == D, "prepared params don't match input width"
    mdt = w1.dtype
    wbytes = jnp.dtype(mdt).itemsize

    cap = _vmem_capacity_bytes()
    budget = max(16 << 20, (cap * 11) // 20)    # ~55% of this generation's VMEM
    # Cap batch tiles so there are >= 2 grid steps whenever possible: lets the batch axis
    # shard across v7x's two TensorCores; costs one extra ~0.35us step on 1-core parts.
    multicore_cap = max(8, _ceil_to((B + 1) // 2, 8))

    fused = None if force_hidden_tiled else _pick_fused_batch_tile(D, H1p, H2p, wbytes, budget)

    if fused is not None:
        tile, fixed, per_row = fused
        tile = min(tile, multicore_cap)
        if batch_tile is not None:
            tile = max(8, _ceil_to(batch_tile, 8))
        vmem_limit = int(min(max(32 << 20, 2 * (fixed + tile * per_row)), (cap * 3) // 4))
        const2 = lambda i: (0, 0)
        return pl.pallas_call(
            functools.partial(_actor_fused_kernel, matmul_dtype=mdt),
            out_shape=jax.ShapeDtypeStruct((B, D), jnp.float32),
            grid_spec=pltpu.PrefetchScalarGridSpec(
                num_scalar_prefetch=0,
                grid=(pl.cdiv(B, tile),),
                in_specs=[
                    pl.BlockSpec((tile, D), lambda i: (i, 0)),   # x, streamed unpadded
                    pl.BlockSpec((D, H1p), const2),              # w1 (resident)
                    pl.BlockSpec((1, H1p), const2),              # b1
                    pl.BlockSpec((H1p, H2p), const2),            # w2
                    pl.BlockSpec((1, H2p), const2),              # b2
                    pl.BlockSpec((H2p, D), const2),              # w3
                    pl.BlockSpec((1, D), const2),                # b3
                ],
                out_specs=pl.BlockSpec((tile, D), lambda i: (i, 0)),
            ),
            compiler_params=pltpu.CompilerParams(
                dimension_semantics=("parallel",),
                vmem_limit_bytes=vmem_limit,
            ),
        )(x, w1, b1, w2, b2, w3, b3)

    # ---- H1-tiled fallback: weights too large to sit resident in VMEM ----
    picked = _pick_h1_tiles(D, H1p, H2p, wbytes, budget, hidden_tile)
    if picked is None:
        # TODO(synk): add H2 tiling for extreme nn_scale instead of raising.
        raise ValueError("Actor weights exceed the H1-tiled VMEM budget; H2 tiling "
                         "is not implemented.")
    tile, th1, fixed, per_row = picked
    tile = min(tile, multicore_cap)
    if batch_tile is not None:
        tile = max(8, _ceil_to(batch_tile, 8))
    vmem_limit = int(min(max(32 << 20, 2 * (fixed + tile * per_row)), (cap * 3) // 4))
    const3 = lambda i, j: (0, 0)
    return pl.pallas_call(
        functools.partial(_actor_h1_tiled_kernel, matmul_dtype=mdt),
        out_shape=jax.ShapeDtypeStruct((B, D), jnp.float32),
        grid_spec=pltpu.PrefetchScalarGridSpec(
            num_scalar_prefetch=0,
            grid=(pl.cdiv(B, tile), H1p // th1),
            in_specs=[
                pl.BlockSpec((tile, D), lambda i, j: (i, 0)),    # x, fetched once per i
                pl.BlockSpec((D, th1), lambda i, j: (0, j)),     # w1 chunk
                pl.BlockSpec((1, th1), lambda i, j: (0, j)),     # b1 chunk
                pl.BlockSpec((th1, H2p), lambda i, j: (j, 0)),   # w2 chunk
                pl.BlockSpec((1, H2p), const3),                  # b2
                pl.BlockSpec((H2p, D), const3),                  # w3 (resident)
                pl.BlockSpec((1, D), const3),                    # b3
            ],
            out_specs=pl.BlockSpec((tile, D), lambda i, j: (i, 0)),
            scratch_shapes=[pltpu.VMEM((tile, H2p), jnp.float32)],
        ),
        compiler_params=pltpu.CompilerParams(
            dimension_semantics=("parallel", "arbitrary"),
            vmem_limit_bytes=vmem_limit,
        ),
    )(x, w1, b1, w2, b2, w3, b3)


# ---------------------------------------------------------------------------
# Pure-JAX reference
# ---------------------------------------------------------------------------
def actor_reference(x, params):
    h1 = jnp.maximum(x @ params["w1"] + params["b1"], 0.0)
    h2 = jnp.maximum(h1 @ params["w2"] + params["b2"], 0.0)
    return jax.nn.sigmoid(h2 @ params["w3"] + params["b3"])


# ---------------------------------------------------------------------------
# Demo / self-test
# ---------------------------------------------------------------------------
if __name__ == "__main__":
    num_inputs = 16
    key = jax.random.PRNGKey(0)
    kx, kp, kp2 = jax.random.split(key, 3)

    # 1) nn_scale=1, f32 matmul path, single grid step: near-exact check.
    params1 = init_actor_params(kp, num_inputs, 1)
    prep_f32 = prepare_params(params1, matmul_dtype=jnp.float32)
    x_small = jax.random.normal(kx, (8, num_inputs), dtype=jnp.float32)
    out_small = jax.block_until_ready(actor_forward(x_small, prep_f32))
    ref_small = actor_reference(x_small, params1)
    assert out_small.shape == (8, num_inputs)
    assert jnp.allclose(out_small, ref_small, atol=2e-3, rtol=2e-3), "f32 small-batch mismatch"

    # 2) bf16 fast path, large non-divisible batch: multi-step grid + partial edge block.
    prep_bf16 = prepare_params(params1, matmul_dtype=jnp.bfloat16)
    x_big = jax.random.normal(jax.random.PRNGKey(1), (1000, num_inputs), dtype=jnp.float32)
    out_big = jax.block_until_ready(actor_forward(x_big, prep_bf16))
    ref_big = actor_reference(x_big, params1)
    assert out_big.shape == (1000, num_inputs)
    assert jnp.allclose(out_big, ref_big, atol=2e-2, rtol=2e-2), "bf16 big-batch mismatch"

    # 3) H1-tiled fallback (forced), nn_scale=8: exercises the reduction grid + accumulator.
    params8 = init_actor_params(kp2, num_inputs, 8)
    prep8 = prepare_params(params8, matmul_dtype=jnp.bfloat16)
    x_mid = jax.random.normal(jax.random.PRNGKey(2), (64, num_inputs), dtype=jnp.float32)
    out_mid = jax.block_until_ready(
        actor_forward(x_mid, prep8, force_hidden_tiled=True, hidden_tile=128))
    ref_mid = actor_reference(x_mid, params8)
    assert out_mid.shape == (64, num_inputs)
    assert jnp.allclose(out_mid, ref_mid, atol=2e-2, rtol=2e-2), "hidden-tiled mismatch"

    print("KERNEL_OK")
</pallas_src>

<mosaic_0001>
module attributes {stable_mosaic.version = 11 : i64} {
  func.func @_actor_fused_kernel(%arg0: i32, %arg1: memref<8x16xf32, #tpu.memory_space<vmem>>, %arg2: memref<16x128xf32, #tpu.memory_space<vmem>>, %arg3: memref<1x128xf32, #tpu.memory_space<vmem>>, %arg4: memref<128x128xf32, #tpu.memory_space<vmem>>, %arg5: memref<1x128xf32, #tpu.memory_space<vmem>>, %arg6: memref<128x16xf32, #tpu.memory_space<vmem>>, %arg7: memref<1x16xf32, #tpu.memory_space<vmem>>, %arg8: memref<8x16xf32, #tpu.memory_space<vmem>>) attributes {dimension_semantics = [#tpu.dimension_semantics<parallel>], iteration_bounds = array<i64: 1>, scalar_prefetch = 0 : i64, scratch_operands = 0 : i64, tpu.core_type = #tpu.core_type<tc>, window_params = [{transform_indices = @transform_0, window_bounds = array<i64: 8, 16>}, {pipeline_mode = #tpu.pipeline_mode<synchronous>, transform_indices = @transform_1, window_bounds = array<i64: 16, 128>}, {pipeline_mode = #tpu.pipeline_mode<synchronous>, transform_indices = @transform_2, window_bounds = array<i64: 1, 128>}, {pipeline_mode = #tpu.pipeline_mode<synchronous>, transform_indices = @transform_3, window_bounds = array<i64: 128, 128>}, {pipeline_mode = #tpu.pipeline_mode<synchronous>, transform_indices = @transform_4, window_bounds = array<i64: 1, 128>}, {pipeline_mode = #tpu.pipeline_mode<synchronous>, transform_indices = @transform_5, window_bounds = array<i64: 128, 16>}, {pipeline_mode = #tpu.pipeline_mode<synchronous>, transform_indices = @transform_6, window_bounds = array<i64: 1, 16>}, {transform_indices = @transform_7, window_bounds = array<i64: 8, 16>}]} {
    %c0 = arith.constant 0 : index
    %c0_0 = arith.constant 0 : index
    %0 = vector.load %arg1[%c0, %c0_0] : memref<8x16xf32, #tpu.memory_space<vmem>>, vector<8x16xf32>
    %c0_1 = arith.constant 0 : index
    %c0_2 = arith.constant 0 : index
    %1 = vector.load %arg2[%c0_1, %c0_2] : memref<16x128xf32, #tpu.memory_space<vmem>>, vector<16x128xf32>
    %cst = arith.constant dense<0.000000e+00> : vector<8x128xf32>
    %2 = tpu.matmul %0, %1, %cst {dimension_numbers = #tpu.dot_dimension_numbers<[1], [0], [0], [1], [0, 0, 1, 1], [], []>} : vector<8x16xf32>, vector<16x128xf32>, vector<8x128xf32> -> vector<8x128xf32>
    %c0_3 = arith.constant 0 : index
    %c0_4 = arith.constant 0 : index
    %3 = vector.load %arg3[%c0_3, %c0_4] : memref<1x128xf32, #tpu.memory_space<vmem>>, vector<1x128xf32>
    %4 = vector.broadcast %3 : vector<1x128xf32> to vector<8x128xf32>
    %5 = arith.addf %2, %4 : vector<8x128xf32>
    %cst_5 = arith.constant 0.000000e+00 : f32
    %6 = vector.broadcast %cst_5 : f32 to vector<8x128xf32>
    %7 = arith.maximumf %5, %6 : vector<8x128xf32>
    %c0_6 = arith.constant 0 : index
    %c0_7 = arith.constant 0 : index
    %8 = vector.load %arg4[%c0_6, %c0_7] : memref<128x128xf32, #tpu.memory_space<vmem>>, vector<128x128xf32>
    %cst_8 = arith.constant dense<0.000000e+00> : vector<8x128xf32>
    %9 = tpu.matmul %7, %8, %cst_8 {dimension_numbers = #tpu.dot_dimension_numbers<[1], [0], [0], [1], [0, 0, 1, 1], [], []>} : vector<8x128xf32>, vector<128x128xf32>, vector<8x128xf32> -> vector<8x128xf32>
    %c0_9 = arith.constant 0 : index
    %c0_10 = arith.constant 0 : index
    %10 = vector.load %arg5[%c0_9, %c0_10] : memref<1x128xf32, #tpu.memory_space<vmem>>, vector<1x128xf32>
    %11 = vector.broadcast %10 : vector<1x128xf32> to vector<8x128xf32>
    %12 = arith.addf %9, %11 : vector<8x128xf32>
    %cst_11 = arith.constant 0.000000e+00 : f32
    %13 = vector.broadcast %cst_11 : f32 to vector<8x128xf32>
    %14 = arith.maximumf %12, %13 : vector<8x128xf32>
    %c0_12 = arith.constant 0 : index
    %c0_13 = arith.constant 0 : index
    %15 = vector.load %arg6[%c0_12, %c0_13] : memref<128x16xf32, #tpu.memory_space<vmem>>, vector<128x16xf32>
    %cst_14 = arith.constant dense<0.000000e+00> : vector<8x16xf32>
    %16 = tpu.matmul %14, %15, %cst_14 {dimension_numbers = #tpu.dot_dimension_numbers<[1], [0], [0], [1], [0, 0, 1, 1], [], []>} : vector<8x128xf32>, vector<128x16xf32>, vector<8x16xf32> -> vector<8x16xf32>
    %c0_15 = arith.constant 0 : index
    %c0_16 = arith.constant 0 : index
    %17 = vector.load %arg7[%c0_15, %c0_16] : memref<1x16xf32, #tpu.memory_space<vmem>>, vector<1x16xf32>
    %18 = vector.broadcast %17 : vector<1x16xf32> to vector<8x16xf32>
    %19 = arith.addf %16, %18 : vector<8x16xf32>
    %cst_17 = arith.constant 0.000000e+00 : f32
    %20 = vector.broadcast %cst_17 : f32 to vector<8x16xf32>
    %21 = arith.subf %20, %19 : vector<8x16xf32>
    %22 = math.exp %21 : vector<8x16xf32>
    %cst_18 = arith.constant 1.000000e+00 : f32
    %23 = vector.broadcast %cst_18 : f32 to vector<8x16xf32>
    %24 = arith.addf %23, %22 : vector<8x16xf32>
    %25 = tpu.reciprocal %24 {approx = true} : vector<8x16xf32> -> vector<8x16xf32>
    %c0_19 = arith.constant 0 : index
    %c0_20 = arith.constant 0 : index
    %26 = vector.load %arg8[%c0_19, %c0_20] : memref<8x16xf32, #tpu.memory_space<vmem>>, vector<8x16xf32>
    tpu.vector_store %arg8[%c0_19, %c0_20], %25 {strides = array<i32>} : memref<8x16xf32, #tpu.memory_space<vmem>>, vector<8x16xf32>,
    return
  }
  func.func @transform_0(%arg0: i32) -> (i32, i32) {
    %c0_i32 = arith.constant 0 : i32
    %c0_i32_0 = arith.constant 0 : i32
    return %arg0, %c0_i32 : i32, i32
  }
  func.func @transform_1(%arg0: i32) -> (i32, i32) {
    %c0_i32 = arith.constant 0 : i32
    %c0_i32_0 = arith.constant 0 : i32
    %c0_i32_1 = arith.constant 0 : i32
    return %c0_i32, %c0_i32_0 : i32, i32
  }
  func.func @transform_2(%arg0: i32) -> (i32, i32) {
    %c0_i32 = arith.constant 0 : i32
    %c0_i32_0 = arith.constant 0 : i32
    %c0_i32_1 = arith.constant 0 : i32
    return %c0_i32, %c0_i32_0 : i32, i32
  }
  func.func @transform_3(%arg0: i32) -> (i32, i32) {
    %c0_i32 = arith.constant 0 : i32
    %c0_i32_0 = arith.constant 0 : i32
    %c0_i32_1 = arith.constant 0 : i32
    return %c0_i32, %c0_i32_0 : i32, i32
  }
  func.func @transform_4(%arg0: i32) -> (i32, i32) {
    %c0_i32 = arith.constant 0 : i32
    %c0_i32_0 = arith.constant 0 : i32
    %c0_i32_1 = arith.constant 0 : i32
    return %c0_i32, %c0_i32_0 : i32, i32
  }
  func.func @transform_5(%arg0: i32) -> (i32, i32) {
    %c0_i32 = arith.constant 0 : i32
    %c0_i32_0 = arith.constant 0 : i32
    %c0_i32_1 = arith.constant 0 : i32
    return %c0_i32, %c0_i32_0 : i32, i32
  }
  func.func @transform_6(%arg0: i32) -> (i32, i32) {
    %c0_i32 = arith.constant 0 : i32
    %c0_i32_0 = arith.constant 0 : i32
    %c0_i32_1 = arith.constant 0 : i32
    return %c0_i32, %c0_i32_0 : i32, i32
  }
  func.func @transform_7(%arg0: i32) -> (i32, i32) {
    %c0_i32 = arith.constant 0 : i32
    %c0_i32_0 = arith.constant 0 : i32
    return %arg0, %c0_i32 : i32, i32
  }
}

</mosaic_0001>

<llo_original>
// kernel: tpu_custom_call.1
$region0: #{tpu_custom_call.1}
  #allocation0 [shape = 'u32[]', space=smem, size = 0x4, offset = 0x4, fixed_abs, tag = 'smem constant byte address 0x4 - core index']
  #allocation1 [shape = 'u32[144,128]{1,0:T(1,128)}', space=vmem, size = 0x12000, scoped, tag = 'internal scratch']
  %s0 = inlined_call_operand.hbm [shape: f32[8,16], index: 0, kind: input, shape index: {}]
  %s1 = inlined_call_operand.vmem [shape: f32[16,128], index: 1, kind: input, shape index: {}]
  %s2 = inlined_call_operand.vmem [shape: f32[1,128], index: 2, kind: input, shape index: {}]
  %s3 = inlined_call_operand.vmem [shape: f32[128,128], index: 3, kind: input, shape index: {}]
  %s4 = inlined_call_operand.vmem [shape: f32[1,128], index: 4, kind: input, shape index: {}]
  %s5 = inlined_call_operand.vmem [shape: f32[128,16], index: 5, kind: input, shape index: {}]
  %s6 = inlined_call_operand.vmem [shape: f32[1,16], index: 6, kind: input, shape index: {}]
  %s7 = inlined_call_operand.hbm [shape: f32[8,16], index: 7, kind: output, shape index: {}]
  %s8 = sld [smem:[#allocation0]]
  $region42: #{tpu_custom_call.1} parent=0
    _
  %s10 = ssub.s32 1, %s8
  %s11 = scalar_select 0, %s10, %s8
  $region1: #{tpu_custom_call.1} parent=0
    #allocation2 [shape = 'u8[4096]{0}', space=vmem, size = 0x1000, scoped, tag = 'input window, operand 0, single buffered']
    #allocation3 [shape = 's32[1]{0}', space=sflag, size = 0x4, scoped, tag = 'scoped memory for tpu_custom_call.1']
    #allocation4 [shape = 's32[1]{0}', space=sflag, size = 0x4, scoped, tag = 'scoped memory for tpu_custom_call.1']
    #allocation5 [shape = 'u8[4096]{0}', space=vmem, size = 0x1000, scoped, tag = 'output window, operand 0, single buffered']
    %12 = vsyncpa [#allocation3], 0
    %13 = vsyncpa [#allocation4], 0
    // Predicated region
    $region2: #{tpu_custom_call.1} parent=1 // pred_check
      _
    $region3: #{tpu_custom_call.1} parent=1 // pred_check_branch
      %15 = sbr.rel (0) target = $region5
    $region4: #{tpu_custom_call.1} parent=1 // pred_region
      %s17 = ssub.s32 128, 128
      %18 = vsyncadd [#allocation3], %s17
      %s20 = sshll.u32 [#allocation2], 4
      %s21 = int_to_ptr.vmem [resolvable:$true] %s20
      %23 = dma.hbm_to_vmem [thread:$0]  %s0, 128, %s21, [#allocation3]
    $region5: #{tpu_custom_call.1} parent=1 // pred_fallthru
      _
    // Predicated region
    $region6: #{tpu_custom_call.1} parent=1 // pred_check
      _
    $region7: #{tpu_custom_call.1} parent=1 // pred_check_branch
      %25 = sbr.rel (0) target = $region9
    $region8: #{tpu_custom_call.1} parent=1 // pred_region
      _
    $region9: #{tpu_custom_call.1} parent=1 // pred_fallthru
      _
    // Predicated region
    $region10: #{tpu_custom_call.1} parent=1 // pred_check
      _
    $region11: #{tpu_custom_call.1} parent=1 // pred_check_branch
      %27 = sbr.rel (0) target = $region13
    $region12: #{tpu_custom_call.1} parent=1 // pred_region
      _
    $region13: #{tpu_custom_call.1} parent=1 // pred_fallthru
      _
    // Predicated region
    $region14: #{tpu_custom_call.1} parent=1 // pred_check
      _
    $region15: #{tpu_custom_call.1} parent=1 // pred_check_branch
      %29 = sbr.rel (0) target = $region17
    $region16: #{tpu_custom_call.1} parent=1 // pred_region
      _
    $region17: #{tpu_custom_call.1} parent=1 // pred_fallthru
      _
    // Predicated region
    $region18: #{tpu_custom_call.1} parent=1 // pred_check
      _
    $region19: #{tpu_custom_call.1} parent=1 // pred_check_branch
      %31 = sbr.rel (0) target = $region21
    $region20: #{tpu_custom_call.1} parent=1 // pred_region
      _
    $region21: #{tpu_custom_call.1} parent=1 // pred_fallthru
      _
    // Predicated region
    $region22: #{tpu_custom_call.1} parent=1 // pred_check
      _
    $region23: #{tpu_custom_call.1} parent=1 // pred_check_branch
      %33 = sbr.rel (0) target = $region25
    $region24: #{tpu_custom_call.1} parent=1 // pred_region
      _
    $region25: #{tpu_custom_call.1} parent=1 // pred_fallthru
      _
    // Predicated region
    $region26: #{tpu_custom_call.1} parent=1 // pred_check
      _
    $region27: #{tpu_custom_call.1} parent=1 // pred_check_branch
      %35 = sbr.rel (0) target = $region29
    $region28: #{tpu_custom_call.1} parent=1 // pred_region
      _
    $region29: #{tpu_custom_call.1} parent=1 // pred_fallthru
      _
    // Predicated region
    $region30: #{tpu_custom_call.1} parent=1 // pred_check
      _
    $region31: #{tpu_custom_call.1} parent=1 // pred_check_branch
      %37 = sbr.rel (0) target = $region33
    $region32: #{tpu_custom_call.1} parent=1 // pred_region
      %38 = dma.done [#allocation3], 128
    $region33: #{tpu_custom_call.1} parent=1 // pred_fallthru
      _
    %v39 = vld [vmem:[#allocation2] sm:$0xff]
    %v40 = vld [vmem:[%s1] sm:$0xff]
    %v41 = vld [vmem:[%s1 + $0x8] sm:$0xff]
    %v42 = vld [vmem:[%s2] sm:$0x1]
    %v44 = vlaneseq
    %v45 = vshrl.u32 %v44, 7
    %v46 = vsub.s32 0, %v45
    %v47 = vrot.slane %v42, %v46
    %vm49 = vcmask 130048
    %v51 = vsel %vm49, %v39, 0
    %53 = vmatprep.subr.mxu0 0.0
    %54 = vmatpush1.msra.mxu0 0.0
    %55 = vmatprep.subr.mxu0 0.0
    %56 = vmatpush1.msra.mxu0 0.0
    %57 = vmatprep.subr.mxu0 0.0
    %58 = vmatpush1.msra.mxu0 0.0
    %59 = vmatprep.subr.mxu0 0.0
    %60 = vmatpush1.msra.mxu0 0.0
    %61 = vmatprep.subr.mxu0 0.0
    %62 = vmatpush1.msra.mxu0 0.0
    %63 = vmatprep.subr.mxu0 0.0
    %64 = vmatpush1.msra.mxu0 0.0
    %65 = vmatprep.subr.mxu0 0.0
    %66 = vmatpush1.msra.mxu0 0.0
    %67 = vmatprep.subr.mxu0 0.0
    %68 = vmatpush1.msra.mxu0 0.0
    %69 = vmatprep.subr.mxu0 0.0
    %70 = vmatpush1.msra.mxu0 0.0
    %71 = vmatprep.subr.mxu0 0.0
    %72 = vmatpush1.msra.mxu0 0.0
    %73 = vmatprep.subr.mxu0 0.0
    %74 = vmatpush1.msra.mxu0 0.0
    %75 = vmatprep.subr.mxu0 0.0
    %76 = vmatpush1.msra.mxu0 0.0
    %77 = vmatprep.subr.mxu0 0.0
    %78 = vmatpush1.msra.mxu0 0.0
    %79 = vmatprep.subr.mxu0 0.0
    %80 = vmatpush1.msra.mxu0 0.0
    %81 = vmatprep.subr.mxu0 0.0
    %82 = vmatpush1.msra.mxu0 %v41
    %83 = vmatprep.subr.mxu0 0.0
    %84 = vmatpush1.msra.mxu0 %v40
    %85 = vmatprep.subr.mxu0 0.0
    %86 = vmatpush2.msra.mxu0 0.0
    %87 = vmatprep.subr.mxu0 0.0
    %88 = vmatpush2.msra.mxu0 0.0
    %89 = vmatprep.subr.mxu0 0.0
    %90 = vmatpush2.msra.mxu0 0.0
    %91 = vmatprep.subr.mxu0 0.0
    %92 = vmatpush2.msra.mxu0 0.0
    %93 = vmatprep.subr.mxu0 0.0
    %94 = vmatpush2.msra.mxu0 0.0
    %95 = vmatprep.subr.mxu0 0.0
    %96 = vmatpush2.msra.mxu0 0.0
    %97 = vmatprep.subr.mxu0 0.0
    %98 = vmatpush2.msra.mxu0 0.0
    %99 = vmatprep.subr.mxu0 0.0
    %100 = vmatpush2.msra.mxu0 0.0
    %101 = vmatprep.subr.mxu0 0.0
    %102 = vmatpush2.msra.mxu0 0.0
    %103 = vmatprep.subr.mxu0 0.0
    %104 = vmatpush2.msra.mxu0 0.0
    %105 = vmatprep.subr.mxu0 0.0
    %106 = vmatpush2.msra.mxu0 0.0
    %107 = vmatprep.subr.mxu0 0.0
    %108 = vmatpush2.msra.mxu0 0.0
    %109 = vmatprep.subr.mxu0 0.0
    %110 = vmatpush2.msra.mxu0 0.0
    %111 = vmatprep.subr.mxu0 0.0
    %112 = vmatpush2.msra.mxu0 0.0
    %113 = vmatprep.subr.mxu0 0.0
    %114 = vmatpush2.msra.mxu0 0.0
    %115 = vmatprep.subr.mxu0 0.0
    %116 = vmatpush2.msra.mxu0 0.0
    %117 = vmatprep.mubr.f32.mxu0 0.0
    %118 = vmatmul.mubr.f32.gmra.mxu0 %v51
    %v119 = vpop.f32.mrf.mxu0
    %v120 = vadd.f32 %v47, %v119
    %v121 = vpop.f32.mrf.mxu0
    %122 = vdwg.mxu0
    %v123 = vmax.f32 %v120, 0.0
    %v124 = vld [vmem:[%s3] sm:$0xff]
    %v125 = vld [vmem:[%s3 + $0x8] sm:$0xff]
    %v126 = vld [vmem:[%s3 + $0x10] sm:$0xff]
    %v127 = vld [vmem:[%s3 + $0x18] sm:$0xff]
    %v128 = vld [vmem:[%s3 + $0x20] sm:$0xff]
    %v129 = vld [vmem:[%s3 + $0x28] sm:$0xff]
    %v130 = vld [vmem:[%s3 + $0x30] sm:$0xff]
    %v131 = vld [vmem:[%s3 + $0x38] sm:$0xff]
    %v132 = vld [vmem:[%s3 + $0x40] sm:$0xff]
    %v133 = vld [vmem:[%s3 + $0x48] sm:$0xff]
    %v134 = vld [vmem:[%s3 + $0x50] sm:$0xff]
    %v135 = vld [vmem:[%s3 + $0x58] sm:$0xff]
    %v136 = vld [vmem:[%s3 + $0x60] sm:$0xff]
    %v137 = vld [vmem:[%s3 + $0x68] sm:$0xff]
    %v138 = vld [vmem:[%s3 + $0x70] sm:$0xff]
    %v139 = vld [vmem:[%s3 + $0x78] sm:$0xff]
    %v140 = vld [vmem:[%s4] sm:$0x1]
    %v142 = vlaneseq
    %v143 = vshrl.u32 %v142, 7
    %v144 = vsub.s32 0, %v143
    %v145 = vrot.slane %v140, %v144
    %147 = vmatprep.subr.mxu0 0.0
    %148 = vmatpush1.msra.mxu0 %v139
    %149 = vmatprep.subr.mxu0 0.0
    %150 = vmatpush1.msra.mxu0 %v138
    %151 = vmatprep.subr.mxu0 0.0
    %152 = vmatpush1.msra.mxu0 %v137
    %153 = vmatprep.subr.mxu0 0.0
    %154 = vmatpush1.msra.mxu0 %v136
    %155 = vmatprep.subr.mxu0 0.0
    %156 = vmatpush1.msra.mxu0 %v135
    %157 = vmatprep.subr.mxu0 0.0
    %158 = vmatpush1.msra.mxu0 %v134
    %159 = vmatprep.subr.mxu0 0.0
    %160 = vmatpush1.msra.mxu0 %v133
    %161 = vmatprep.subr.mxu0 0.0
    %162 = vmatpush1.msra.mxu0 %v132
    %163 = vmatprep.subr.mxu0 0.0
    %164 = vmatpush1.msra.mxu0 %v131
    %165 = vmatprep.subr.mxu0 0.0
    %166 = vmatpush1.msra.mxu0 %v130
    %167 = vmatprep.subr.mxu0 0.0
    %168 = vmatpush1.msra.mxu0 %v129
    %169 = vmatprep.subr.mxu0 0.0
    %170 = vmatpush1.msra.mxu0 %v128
    %171 = vmatprep.subr.mxu0 0.0
    %172 = vmatpush1.msra.mxu0 %v127
    %173 = vmatprep.subr.mxu0 0.0
    %174 = vmatpush1.msra.mxu0 %v126
    %175 = vmatprep.subr.mxu0 0.0
    %176 = vmatpush1.msra.mxu0 %v125
    %177 = vmatprep.subr.mxu0 0.0
    %178 = vmatpush1.msra.mxu0 %v124
    %179 = vmatprep.subr.mxu0 0.0
    %180 = vmatpush2.msra.mxu0 0.0
    %181 = vmatprep.subr.mxu0 0.0
    %182 = vmatpush2.msra.mxu0 0.0
    %183 = vmatprep.subr.mxu0 0.0
    %184 = vmatpush2.msra.mxu0 0.0
    %185 = vmatprep.subr.mxu0 0.0
    %186 = vmatpush2.msra.mxu0 0.0
    %187 = vmatprep.subr.mxu0 0.0
    %188 = vmatpush2.msra.mxu0 0.0
    %189 = vmatprep.subr.mxu0 0.0
    %190 = vmatpush2.msra.mxu0 0.0
    %191 = vmatprep.subr.mxu0 0.0
    %192 = vmatpush2.msra.mxu0 0.0
    %193 = vmatprep.subr.mxu0 0.0
    %194 = vmatpush2.msra.mxu0 0.0
    %195 = vmatprep.subr.mxu0 0.0
    %196 = vmatpush2.msra.mxu0 0.0
    %197 = vmatprep.subr.mxu0 0.0
    %198 = vmatpush2.msra.mxu0 0.0
    %199 = vmatprep.subr.mxu0 0.0
    %200 = vmatpush2.msra.mxu0 0.0
    %201 = vmatprep.subr.mxu0 0.0
    %202 = vmatpush2.msra.mxu0 0.0
    %203 = vmatprep.subr.mxu0 0.0
    %204 = vmatpush2.msra.mxu0 0.0
    %205 = vmatprep.subr.mxu0 0.0
    %206 = vmatpush2.msra.mxu0 0.0
    %207 = vmatprep.subr.mxu0 0.0
    %208 = vmatpush2.msra.mxu0 0.0
    %209 = vmatprep.subr.mxu0 0.0
    %210 = vmatpush2.msra.mxu0 0.0
    %211 = vmatprep.mubr.f32.mxu0 0.0
    %212 = vmatmul.mubr.f32.gmra.mxu0 %v123
    %v213 = vpop.f32.mrf.mxu0
    %v214 = vadd.f32 %v145, %v213
    %v215 = vpop.f32.mrf.mxu0
    %216 = vdwg.mxu0
    %v217 = vmax.f32 %v214, 0.0
    %v218 = vld [vmem:[%s5] sm:$0xff]
    %v219 = vld [vmem:[%s5 + $0x8] sm:$0xff]
    %v220 = vld [vmem:[%s5 + $0x10] sm:$0xff]
    %v221 = vld [vmem:[%s5 + $0x18] sm:$0xff]
    %v222 = vld [vmem:[%s5 + $0x20] sm:$0xff]
    %v223 = vld [vmem:[%s5 + $0x28] sm:$0xff]
    %v224 = vld [vmem:[%s5 + $0x30] sm:$0xff]
    %v225 = vld [vmem:[%s5 + $0x38] sm:$0xff]
    %v226 = vld [vmem:[%s5 + $0x40] sm:$0xff]
    %v227 = vld [vmem:[%s5 + $0x48] sm:$0xff]
    %v228 = vld [vmem:[%s5 + $0x50] sm:$0xff]
    %v229 = vld [vmem:[%s5 + $0x58] sm:$0xff]
    %v230 = vld [vmem:[%s5 + $0x60] sm:$0xff]
    %v231 = vld [vmem:[%s5 + $0x68] sm:$0xff]
    %v232 = vld [vmem:[%s5 + $0x70] sm:$0xff]
    %v233 = vld [vmem:[%s5 + $0x78] sm:$0xff]
    %v234 = vld [vmem:[%s6] sm:$0x1]
    %v236 = vlaneseq
    %v237 = vshrl.u32 %v236, 7
    %v238 = vsub.s32 0, %v237
    %v239 = vrot.slane %v234, %v238
    %241 = vmatprep.subr.mxu0 0.0
    %242 = vmatpush1.msra.mxu0 %v233
    %243 = vmatprep.subr.mxu0 0.0
    %244 = vmatpush1.msra.mxu0 %v232
    %245 = vmatprep.subr.mxu0 0.0
    %246 = vmatpush1.msra.mxu0 %v231
    %247 = vmatprep.subr.mxu0 0.0
    %248 = vmatpush1.msra.mxu0 %v230
    %249 = vmatprep.subr.mxu0 0.0
    %250 = vmatpush1.msra.mxu0 %v229
    %251 = vmatprep.subr.mxu0 0.0
    %252 = vmatpush1.msra.mxu0 %v228
    %253 = vmatprep.subr.mxu0 0.0
    %254 = vmatpush1.msra.mxu0 %v227
    %255 = vmatprep.subr.mxu0 0.0
    %256 = vmatpush1.msra.mxu0 %v226
    %257 = vmatprep.subr.mxu0 0.0
    %258 = vmatpush1.msra.mxu0 %v225
    %259 = vmatprep.subr.mxu0 0.0
    %260 = vmatpush1.msra.mxu0 %v224
    %261 = vmatprep.subr.mxu0 0.0
    %262 = vmatpush1.msra.mxu0 %v223
    %263 = vmatprep.subr.mxu0 0.0
    %264 = vmatpush1.msra.mxu0 %v222
    %265 = vmatprep.subr.mxu0 0.0
    %266 = vmatpush1.msra.mxu0 %v221
    %267 = vmatprep.subr.mxu0 0.0
    %268 = vmatpush1.msra.mxu0 %v220
    %269 = vmatprep.subr.mxu0 0.0
    %270 = vmatpush1.msra.mxu0 %v219
    %271 = vmatprep.subr.mxu0 0.0
    %272 = vmatpush1.msra.mxu0 %v218
    %273 = vmatprep.subr.mxu0 0.0
    %274 = vmatpush2.msra.mxu0 0.0
    %275 = vmatprep.subr.mxu0 0.0
    %276 = vmatpush2.msra.mxu0 0.0
    %277 = vmatprep.subr.mxu0 0.0
    %278 = vmatpush2.msra.mxu0 0.0
    %279 = vmatprep.subr.mxu0 0.0
    %280 = vmatpush2.msra.mxu0 0.0
    %281 = vmatprep.subr.mxu0 0.0
    %282 = vmatpush2.msra.mxu0 0.0
    %283 = vmatprep.subr.mxu0 0.0
    %284 = vmatpush2.msra.mxu0 0.0
    %285 = vmatprep.subr.mxu0 0.0
    %286 = vmatpush2.msra.mxu0 0.0
    %287 = vmatprep.subr.mxu0 0.0
    %288 = vmatpush2.msra.mxu0 0.0
    %289 = vmatprep.subr.mxu0 0.0
    %290 = vmatpush2.msra.mxu0 0.0
    %291 = vmatprep.subr.mxu0 0.0
    %292 = vmatpush2.msra.mxu0 0.0
    %293 = vmatprep.subr.mxu0 0.0
    %294 = vmatpush2.msra.mxu0 0.0
    %295 = vmatprep.subr.mxu0 0.0
    %296 = vmatpush2.msra.mxu0 0.0
    %297 = vmatprep.subr.mxu0 0.0
    %298 = vmatpush2.msra.mxu0 0.0
    %299 = vmatprep.subr.mxu0 0.0
    %300 = vmatpush2.msra.mxu0 0.0
    %301 = vmatprep.subr.mxu0 0.0
    %302 = vmatpush2.msra.mxu0 0.0
    %303 = vmatprep.subr.mxu0 0.0
    %304 = vmatpush2.msra.mxu0 0.0
    %305 = vmatprep.mubr.f32.mxu0 0.0
    %306 = vmatmul.mubr.f32.gmra.mxu0 %v217
    %v307 = vpop.f32.mrf.mxu0
    %v308 = vadd.f32 %v239, %v307
    %v309 = vpop.f32.mrf.mxu0
    %310 = vdwg.mxu0
    %v311 = vsub.f32 0.0, %v308
    %v312 = vmul.f32 %v311, 1.442695
    %v313 = vpow.pop %v312
    %v314 = vadd.f32 %v313, 1.0
    %v315 = vrcp.pop %v314
    %316 = vst.msk [vmem:[#allocation5] sm:$0xff] %vm49, %v315
    // Predicated region
    $region34: #{tpu_custom_call.1} parent=1 // pred_check
      _
    $region35: #{tpu_custom_call.1} parent=1 // pred_check_branch
      %318 = sbr.rel (0) target = $region37
    $region36: #{tpu_custom_call.1} parent=1 // pred_region
      %s320 = ssub.s32 128, 128
      %321 = vsyncadd [#allocation4], %s320
      %s323 = sshll.u32 [#allocation5], 4
      %s324 = int_to_ptr.vmem [resolvable:$true] %s323
      %326 = dma.vmem_to_hbm [thread:$0]  %s324, 128, %s7, [#allocation4]
    $region37: #{tpu_custom_call.1} parent=1 // pred_fallthru
      _
    // Predicated region
    $region38: #{tpu_custom_call.1} parent=1 // pred_check
      _
    $region39: #{tpu_custom_call.1} parent=1 // pred_check_branch
      %328 = sbr.rel (0) target = $region41
    $region40: #{tpu_custom_call.1} parent=1 // pred_region
      %329 = dma.done [#allocation4], 128
    $region41: #{tpu_custom_call.1} parent=1 // pred_fallthru
      _
    %330 = vsyncpa [#allocation3], 1
    %331 = vsyncpa [#allocation4], 1

</llo_original>
